<compile_context>
chip_gen: v7x
topology: tpu7x:2x2x1
jax: 0.10.0
libtpu: 0.0.40
codegen_flags: <defaults>
</compile_context>

<pallas_src>
import functools

import jax
import jax.numpy as jnp
from jax.experimental import pallas as pl
from jax.experimental.pallas import tpu as pltpu


# ----------------------------- Pallas kernel ------------------------------

def _mlp_kernel(x_ref, wgu_ref, wd_ref, o_ref, acc_ref, *, ti):
    """One (tm, ti) tile of the fused Llama MLP.

    x_ref  : [tm, H]      input dtype (f32 or bf16); same tile reused over I
    wgu_ref: [H, 2*ti]    bf16, fused [gate_j | up_j] weight tile
    wd_ref : [ti, H]      bf16, down_proj tile
    o_ref  : [tm, H]      bf16 output tile (written on the last I step)
    acc_ref: [tm, H]      f32 VMEM accumulator across the I axis
    """
    j = pl.program_id(1)

    @pl.when(j == 0)
    def _():
        acc_ref[...] = jnp.zeros_like(acc_ref)

    # Cast activations to bf16 at the MXU input; accumulate in f32.
    x = x_ref[...].astype(jnp.bfloat16)                              # [tm, H]
    gu = jnp.dot(x, wgu_ref[...], preferred_element_type=jnp.float32)  # [tm, 2*ti]

    gate = gu[:, :ti]                                                # f32 [tm, ti]
    up = gu[:, ti:]                                                  # f32 [tm, ti]

    # SiLU(gate) * up in f32 (EUP sigmoid + VPU muls hide under the MXU).
    h = gate * jax.nn.sigmoid(gate) * up                             # f32 [tm, ti]

    # down_proj partial product, accumulated in f32.
    acc_ref[...] += jnp.dot(h.astype(wd_ref.dtype), wd_ref[...],
                            preferred_element_type=jnp.float32)

    @pl.when(j == pl.num_programs(1) - 1)
    def _():
        o_ref[...] = acc_ref[...].astype(o_ref.dtype)


# ----------------------------- weight fusion --------------------------------

def fuse_gate_up(wg, wu, *, ti):
    """Fuse gate/up weights into [H, 2I] where column block j = [gate_j | up_j].

    Do this ONCE at weight-load time (outside the jitted forward), so the kernel
    streams a single weight tensor.  `ti` must match the kernel's ti.
    """
    H, I = wg.shape
    assert wu.shape == (H, I)
    assert I % ti == 0, f"I={I} not divisible by ti={ti}"
    nb = I // ti
    wg_b = wg.reshape(H, nb, ti)
    wu_b = wu.reshape(H, nb, ti)
    return jnp.concatenate([wg_b, wu_b], axis=2).reshape(H, 2 * I)


# ----------------------------- wrapper -------------------------------------

def llama_mlp(x, w_gu, wd, *, tm=512, ti=256, out_dtype=jnp.bfloat16):
    """Fused Llama MLP.

    x    : [M, H]     activations (f32 or bf16; cast to bf16 inside the kernel)
    w_gu : [H, 2I]    bf16 fused gate/up weight (see fuse_gate_up, same ti)
    wd   : [I, H]     bf16 down_proj weight (stored [in, out])
    returns [M, H] in out_dtype (default bf16).
    """
    M, H = x.shape
    assert w_gu.shape[0] == H and w_gu.shape[1] % 2 == 0
    I = w_gu.shape[1] // 2
    assert wd.shape == (I, H)

    tm = min(tm, M)
    ti = min(ti, I)
    assert M % tm == 0, f"M={M} not divisible by tm={tm}"
    assert I % ti == 0, f"I={I} not divisible by ti={ti}"

    grid = (M // tm, I // ti)
    out_itemsize = jnp.dtype(out_dtype).itemsize

    # VMEM footprint: double-buffered streamed tiles + resident f32 accumulator.
    # (x is also double-buffered by default; with pipeline_mode=pl.Buffered(1)
    # it could be single-buffered since its block index is constant over j.)
    footprint = (
        2 * tm * H * x.dtype.itemsize          # x tile
        + 2 * H * (2 * ti) * w_gu.dtype.itemsize  # fused gate/up tile
        + 2 * ti * H * wd.dtype.itemsize       # down_proj tile
        + 2 * tm * H * out_itemsize            # output tile
        + tm * H * 4                           # f32 accumulator scratch
    )
    vmem_limit = int(min(max(footprint + (8 << 20), 32 << 20), 64 << 20))
    if footprint > vmem_limit:
        raise ValueError(
            f"tile footprint {footprint/2**20:.1f} MiB exceeds VMEM budget "
            f"{vmem_limit/2**20:.1f} MiB; reduce tm/ti")

    # Advisory cost hint for XLA scheduling around the custom call.
    cost = pl.CostEstimate(
        flops=6 * M * H * I,
        transcendentals=M * I,
        bytes_accessed=(M * H * x.dtype.itemsize
                        + (w_gu.nbytes + wd.nbytes) * (M // tm)
                        + M * H * out_itemsize),
    )

    kernel = functools.partial(_mlp_kernel, ti=ti)

    return pl.pallas_call(
        kernel,
        out_shape=jax.ShapeDtypeStruct((M, H), out_dtype),
        grid_spec=pltpu.PrefetchScalarGridSpec(
            num_scalar_prefetch=0,
            grid=grid,
            in_specs=[
                pl.BlockSpec((tm, H), lambda i, j: (i, 0)),        # x rows (reused over I)
                pl.BlockSpec((H, 2 * ti), lambda i, j: (0, j)),    # fused [gate_j|up_j]
                pl.BlockSpec((ti, H), lambda i, j: (j, 0)),        # down_proj rows
            ],
            # Same output block for every I step -> resident accumulator target.
            out_specs=pl.BlockSpec((tm, H), lambda i, j: (i, 0)),
            scratch_shapes=[pltpu.VMEM((tm, H), jnp.float32)],
        ),
        compiler_params=pltpu.CompilerParams(
            dimension_semantics=("parallel", "arbitrary"),
            vmem_limit_bytes=vmem_limit),
        cost_estimate=cost,
    )(x, w_gu, wd)


# ----------------------------- demo / check --------------------------------

if __name__ == "__main__":
    key = jax.random.PRNGKey(0)
    k1, k2, k3, k4 = jax.random.split(key, 4)

    # Small shapes consistent with the module: hidden_size=256, intermediate=512.
    B, S, H, I = 4, 32, 256, 512
    M = B * S
    # Small tiles so the toy problem exercises both grid axes (grid = (2, 4));
    # production would use the defaults (tm=512, ti=256).
    TM, TI = 64, 128

    x = jax.random.normal(k1, (B, S, H), dtype=jnp.float32)
    wg = (jax.random.normal(k2, (H, I), dtype=jnp.float32) * 0.02).astype(jnp.bfloat16)
    wu = (jax.random.normal(k3, (H, I), dtype=jnp.float32) * 0.02).astype(jnp.bfloat16)
    wd = (jax.random.normal(k4, (I, H), dtype=jnp.float32) * 0.02).astype(jnp.bfloat16)

    # One-time weight fusion (outside the jitted forward).
    w_gu = fuse_gate_up(wg, wu, ti=TI)

    mlp_fn = jax.jit(functools.partial(llama_mlp, tm=TM, ti=TI))

    out = mlp_fn(x.reshape(M, H), w_gu, wd)
    jax.block_until_ready(out)
    out = out.reshape(B, S, H)

    # Plain-JAX reference with the same quantization points as the kernel:
    # bf16 x and weights at the MXU inputs, f32 accumulation, bf16 h, bf16 out.
    xb = x.reshape(M, H).astype(jnp.bfloat16).astype(jnp.float32)
    wg_f, wu_f, wd_f = (w.astype(jnp.float32) for w in (wg, wu, wd))
    g = xb @ wg_f
    u = xb @ wu_f
    h = (g * jax.nn.sigmoid(g) * u).astype(jnp.bfloat16).astype(jnp.float32)
    ref = (h @ wd_f).astype(jnp.bfloat16).astype(jnp.float32).reshape(B, S, H)

    out_f = out.astype(jnp.float32)
    assert out.shape == (B, S, H)
    assert out.dtype == jnp.bfloat16
    assert bool(jnp.all(jnp.isfinite(out_f)))
    assert bool(jnp.allclose(out_f, ref, rtol=2e-2, atol=2e-2)), (
        float(jnp.max(jnp.abs(out_f - ref))))
    print("KERNEL_OK")
</pallas_src>

<mosaic_0001>
module attributes {stable_mosaic.version = 11 : i64} {
  func.func @_mlp_kernel(%arg0: i32, %arg1: i32, %arg2: memref<64x256xf32, #tpu.memory_space<vmem>>, %arg3: memref<256x256xbf16, #tpu.memory_space<vmem>>, %arg4: memref<128x256xbf16, #tpu.memory_space<vmem>>, %arg5: memref<64x256xbf16, #tpu.memory_space<vmem>>, %arg6: memref<64x256xf32, #tpu.memory_space<vmem>>) attributes {dimension_semantics = [#tpu.dimension_semantics<parallel>, #tpu.dimension_semantics<arbitrary>], iteration_bounds = array<i64: 2, 4>, scalar_prefetch = 0 : i64, scratch_operands = 1 : i64, tpu.core_type = #tpu.core_type<tc>, window_params = [{transform_indices = @transform_0, window_bounds = array<i64: 64, 256>}, {transform_indices = @transform_1, window_bounds = array<i64: 256, 256>}, {transform_indices = @transform_2, window_bounds = array<i64: 128, 256>}, {transform_indices = @transform_3, window_bounds = array<i64: 64, 256>}]} {
    %c0_i32 = arith.constant 0 : i32
    %0 = arith.cmpi eq, %arg1, %c0_i32 : i32
    %1 = arith.extui %0 : i1 to i32
    %c0_i32_0 = arith.constant 0 : i32
    %2 = arith.cmpi ne, %1, %c0_i32_0 : i32
    scf.if %2 {
      %cst_13 = arith.constant 0.000000e+00 : f32
      %25 = vector.broadcast %cst_13 : f32 to vector<64x256xf32>
      %c0_14 = arith.constant 0 : index
      %c0_15 = arith.constant 0 : index
      %26 = vector.load %arg6[%c0_14, %c0_15] : memref<64x256xf32, #tpu.memory_space<vmem>>, vector<64x256xf32>
      tpu.vector_store %arg6[%c0_14, %c0_15], %25 {strides = array<i32>} : memref<64x256xf32, #tpu.memory_space<vmem>>, vector<64x256xf32>,
    } else {
    }
    %c0 = arith.constant 0 : index
    %c0_1 = arith.constant 0 : index
    %3 = vector.load %arg2[%c0, %c0_1] : memref<64x256xf32, #tpu.memory_space<vmem>>, vector<64x256xf32>
    %4 = arith.truncf %3 : vector<64x256xf32> to vector<64x256xbf16>
    %c0_2 = arith.constant 0 : index
    %c0_3 = arith.constant 0 : index
    %5 = vector.load %arg3[%c0_2, %c0_3] : memref<256x256xbf16, #tpu.memory_space<vmem>>, vector<256x256xbf16>
    %cst = arith.constant dense<0.000000e+00> : vector<64x256xf32>
    %6 = tpu.matmul %4, %5, %cst {dimension_numbers = #tpu.dot_dimension_numbers<[1], [0], [0], [1], [0, 0, 1, 1], [], []>} : vector<64x256xbf16>, vector<256x256xbf16>, vector<64x256xf32> -> vector<64x256xf32>
    %7 = vector.extract_strided_slice %6 {offsets = [0, 0], sizes = [64, 128], strides = [1, 1]} : vector<64x256xf32> to vector<64x128xf32>
    %8 = vector.extract_strided_slice %6 {offsets = [0, 128], sizes = [64, 128], strides = [1, 1]} : vector<64x256xf32> to vector<64x128xf32>
    %9 = arith.negf %7 : vector<64x128xf32>
    %10 = math.exp %9 : vector<64x128xf32>
    %cst_4 = arith.constant 1.000000e+00 : f32
    %11 = vector.broadcast %cst_4 : f32 to vector<64x128xf32>
    %12 = arith.addf %11, %10 : vector<64x128xf32>
    %13 = arith.divf %11, %12 : vector<64x128xf32>
    %14 = arith.mulf %7, %13 : vector<64x128xf32>
    %15 = arith.mulf %14, %8 : vector<64x128xf32>
    %c0_5 = arith.constant 0 : index
    %c0_6 = arith.constant 0 : index
    %16 = vector.load %arg6[%c0_5, %c0_6] : memref<64x256xf32, #tpu.memory_space<vmem>>, vector<64x256xf32>
    %17 = arith.truncf %15 : vector<64x128xf32> to vector<64x128xbf16>
    %c0_7 = arith.constant 0 : index
    %c0_8 = arith.constant 0 : index
    %18 = vector.load %arg4[%c0_7, %c0_8] : memref<128x256xbf16, #tpu.memory_space<vmem>>, vector<128x256xbf16>
    %cst_9 = arith.constant dense<0.000000e+00> : vector<64x256xf32>
    %19 = tpu.matmul %17, %18, %cst_9 {dimension_numbers = #tpu.dot_dimension_numbers<[1], [0], [0], [1], [0, 0, 1, 1], [], []>} : vector<64x128xbf16>, vector<128x256xbf16>, vector<64x256xf32> -> vector<64x256xf32>
    %20 = arith.addf %16, %19 : vector<64x256xf32>
    %c0_10 = arith.constant 0 : index
    %c0_11 = arith.constant 0 : index
    %21 = vector.load %arg6[%c0_10, %c0_11] : memref<64x256xf32, #tpu.memory_space<vmem>>, vector<64x256xf32>
    tpu.vector_store %arg6[%c0_10, %c0_11], %20 {strides = array<i32>} : memref<64x256xf32, #tpu.memory_space<vmem>>, vector<64x256xf32>,
    %c3_i32 = arith.constant 3 : i32
    %22 = arith.cmpi eq, %arg1, %c3_i32 : i32
    %23 = arith.extui %22 : i1 to i32
    %c0_i32_12 = arith.constant 0 : i32
    %24 = arith.cmpi ne, %23, %c0_i32_12 : i32
    scf.if %24 {
      %c0_13 = arith.constant 0 : index
      %c0_14 = arith.constant 0 : index
      %25 = vector.load %arg6[%c0_13, %c0_14] : memref<64x256xf32, #tpu.memory_space<vmem>>, vector<64x256xf32>
      %26 = arith.truncf %25 : vector<64x256xf32> to vector<64x256xbf16>
      %c0_15 = arith.constant 0 : index
      %c0_16 = arith.constant 0 : index
      %27 = vector.load %arg5[%c0_15, %c0_16] : memref<64x256xbf16, #tpu.memory_space<vmem>>, vector<64x256xbf16>
      tpu.vector_store %arg5[%c0_15, %c0_16], %26 {strides = array<i32>} : memref<64x256xbf16, #tpu.memory_space<vmem>>, vector<64x256xbf16>,
    } else {
    }
    return
  }
  func.func @transform_0(%arg0: i32, %arg1: i32) -> (i32, i32) {
    %c0_i32 = arith.constant 0 : i32
    %c0_i32_0 = arith.constant 0 : i32
    return %arg0, %c0_i32 : i32, i32
  }
  func.func @transform_1(%arg0: i32, %arg1: i32) -> (i32, i32) {
    %c0_i32 = arith.constant 0 : i32
    %c0_i32_0 = arith.constant 0 : i32
    return %c0_i32, %arg1 : i32, i32
  }
  func.func @transform_2(%arg0: i32, %arg1: i32) -> (i32, i32) {
    %c0_i32 = arith.constant 0 : i32
    %c0_i32_0 = arith.constant 0 : i32
    return %arg1, %c0_i32 : i32, i32
  }
  func.func @transform_3(%arg0: i32, %arg1: i32) -> (i32, i32) {
    %c0_i32 = arith.constant 0 : i32
    %c0_i32_0 = arith.constant 0 : i32
    return %arg0, %c0_i32 : i32, i32
  }
}

</mosaic_0001>

<llo_original>
// kernel: llama_mlp.1
$region0: #{llama_mlp.1}
  #allocation0 [shape = 'u32[]', space=smem, size = 0x4, offset = 0x4, fixed_abs, tag = 'smem constant byte address 0x4 - core index']
  #allocation1 [shape = 'u32[144,128]{1,0:T(1,128)}', space=vmem, size = 0x12000, scoped, tag = 'internal scratch']
  #allocation2 [shape = 'f32[64,256]{1,0:T(8,128)}', space=vmem, size = 0x10000, scoped, tag = 'scratch operand']
  %s0 = inlined_call_operand.hbm [shape: f32[128,256], index: 0, kind: input, shape index: {}]
  %s1 = inlined_call_operand.hbm [shape: bf16[256,1024], index: 1, kind: input, shape index: {}]
  %s2 = inlined_call_operand.hbm [shape: bf16[512,256], index: 2, kind: input, shape index: {}]
  %s3 = inlined_call_operand.hbm [shape: bf16[128,256], index: 3, kind: output, shape index: {}]
  %s4 = sld [smem:[#allocation0]]
  $region65: #{llama_mlp.1} parent=0
    _
  %s6 = ssub.s32 1, %s4
  %s7 = scalar_select 0, %s6, %s4
  $region1: #{llama_mlp.1} parent=0
    #allocation3 [shape = 'u8[131072]{0}', space=vmem, size = 0x20000, scoped, tag = 'input window, operand 0']
    #allocation4 [shape = 's32[2]{0}', space=sflag, size = 0x8, scoped, tag = 'scoped memory for llama_mlp.1']
    #allocation5 [shape = 's32[2]{0}', space=sflag, size = 0x8, scoped, tag = 'scoped memory for llama_mlp.1']
    #allocation6 [shape = 'u8[262144]{0}', space=vmem, size = 0x40000, scoped, tag = 'input window, operand 1']
    #allocation7 [shape = 's32[2]{0}', space=sflag, size = 0x8, scoped, tag = 'scoped memory for llama_mlp.1']
    #allocation8 [shape = 'u8[131072]{0}', space=vmem, size = 0x20000, scoped, tag = 'input window, operand 2']
    #allocation9 [shape = 'u8[65536]{0}', space=vmem, size = 0x10000, scoped, tag = 'output window, operand 0']
    %8 = vsyncpa [#allocation4], 0
    %s9 = scalar_lea.sflag [#allocation4], 1
    %10 = vsyncpa %s9, 0
    %11 = vsyncpa [#allocation7], 0
    %s12 = scalar_lea.sflag [#allocation7], 1
    %13 = vsyncpa %s12, 0
    %14 = vsyncpa [#allocation5], 0
    %s15 = scalar_lea.sflag [#allocation5], 1
    %16 = vsyncpa %s15, 0
    loop: start=0, step=1, limit=10
    $region2: #{llama_mlp.1} parent=1 // loop_pre_header
      _
    $region3: #{llama_mlp.1} parent=1 // loop_header
      %s18 = sphi 0, %s22
      %p19 = scmp.ge.s32.totalorder %s18, 10
      %s25 = sphi 0, %s37
      %s26 = sphi 0, %s33
      %s27 = sphi 0, %s25
      %s28 = sphi 0, %s26
      %s29 = sphi 0, %s27
      %s30 = sphi 0, %s28
      %s40 = sphi 0, %s42
      %s43 = sphi 0, %s40
      %s44 = sphi 0, %s43
      %s60 = sphi 0, %s44
      %s66 = sphi 0, %s68
      %s69 = sphi 0, %s66
      %s70 = sphi 0, %s69
      %s86 = sphi 0, %s70
      %s92 = sphi 0, %s94
      %s95 = sphi 0, %s92
      %s96 = sphi 0, %s95
      %s112 = sphi 0, %s96
      %s118 = sphi 0, %s120
      %s121 = sphi 0, %s118
      %s122 = sphi 0, %s121
      %s138 = sphi 0, %s122
    $region4: #{llama_mlp.1} parent=1 // loop_header_branch
      %21 = sbr.rel (%p19) target = $region8
    $region5: #{llama_mlp.1} parent=1 // loop_body
      %s23 = ssub.s32 %s18, 1
      %s24 = ssub.s32 %s18, 2
      %s31 = sadd.s32 1, %s26
      %p32 = scmp.ge.s32.totalorder %s31, 4
      %s33 = scalar_select %p32, 0, %s31
      %s34 = sadd.s32 1, %s25
      %s35 = scalar_select %p32, %s34, %s25
      %p36 = scmp.ge.s32.totalorder %s35, 2
      %s37 = scalar_select %p36, 0, %s35
      %s38 = ssub.s32 %s25, %s37
      %p39 = scmp.eq.s32.totalorder %s38, 0
      %s41 = sadd.s32 %s40, 1
      %s42 = scalar_select %p39, %s40, %s41
      %p45 = pneg %p39
      %p46 = scmp.eq.s32.totalorder %s18, 7
      %p47 = por %p45, %p46
      %p48 = scmp.ne.s32.totalorder %s40, %s43
      %p49 = scmp.eq.s32.totalorder %s18, 0
      %p50 = por %p48, %p49
      %p51 = scmp.ne.s32.totalorder %s40, %s43
      %p52 = scmp.eq.s32.totalorder %s23, 7
      %p53 = por %p51, %p52
      %p54 = scmp.ne.s32.totalorder %s43, %s44
      %p55 = scmp.eq.s32.totalorder %s23, 0
      %p56 = por %p54, %p55
      %p57 = scmp.ne.s32.totalorder %s43, %s44
      %p58 = scmp.eq.s32.totalorder %s24, 7
      %p59 = por %p57, %p58
      %p61 = scmp.ne.s32.totalorder %s44, %s60
      %p62 = scmp.eq.s32.totalorder %s24, 0
      %p63 = por %p61, %p62
      %s64 = ssub.s32 %s26, %s33
      %p65 = scmp.eq.s32.totalorder %s64, 0
      %s67 = sadd.s32 %s66, 1
      %s68 = scalar_select %p65, %s66, %s67
      %p71 = pneg %p65
      %p72 = scmp.eq.s32.totalorder %s18, 7
      %p73 = por %p71, %p72
      %p74 = scmp.ne.s32.totalorder %s66, %s69
      %p75 = scmp.eq.s32.totalorder %s18, 0
      %p76 = por %p74, %p75
      %p77 = scmp.ne.s32.totalorder %s66, %s69
      %p78 = scmp.eq.s32.totalorder %s23, 7
      %p79 = por %p77, %p78
      %p80 = scmp.ne.s32.totalorder %s69, %s70
      %p81 = scmp.eq.s32.totalorder %s23, 0
      %p82 = por %p80, %p81
      %p83 = scmp.ne.s32.totalorder %s69, %s70
      %p84 = scmp.eq.s32.totalorder %s24, 7
      %p85 = por %p83, %p84
      %p87 = scmp.ne.s32.totalorder %s70, %s86
      %p88 = scmp.eq.s32.totalorder %s24, 0
      %p89 = por %p87, %p88
      %s90 = ssub.s32 %s26, %s33
      %p91 = scmp.eq.s32.totalorder %s90, 0
      %s93 = sadd.s32 %s92, 1
      %s94 = scalar_select %p91, %s92, %s93
      %p97 = pneg %p91
      %p98 = scmp.eq.s32.totalorder %s18, 7
      %p99 = por %p97, %p98
      %p100 = scmp.ne.s32.totalorder %s92, %s95
      %p101 = scmp.eq.s32.totalorder %s18, 0
      %p102 = por %p100, %p101
      %p103 = scmp.ne.s32.totalorder %s92, %s95
      %p104 = scmp.eq.s32.totalorder %s23, 7
      %p105 = por %p103, %p104
      %p106 = scmp.ne.s32.totalorder %s95, %s96
      %p107 = scmp.eq.s32.totalorder %s23, 0
      %p108 = por %p106, %p107
      %p109 = scmp.ne.s32.totalorder %s95, %s96
      %p110 = scmp.eq.s32.totalorder %s24, 7
      %p111 = por %p109, %p110
      %p113 = scmp.ne.s32.totalorder %s96, %s112
      %p114 = scmp.eq.s32.totalorder %s24, 0
      %p115 = por %p113, %p114
      %s116 = ssub.s32 %s25, %s37
      %p117 = scmp.eq.s32.totalorder %s116, 0
      %s119 = sadd.s32 %s118, 1
      %s120 = scalar_select %p117, %s118, %s119
      %p123 = pneg %p117
      %p124 = scmp.eq.s32.totalorder %s18, 7
      %p125 = por %p123, %p124
      %p126 = scmp.ne.s32.totalorder %s118, %s121
      %p127 = scmp.eq.s32.totalorder %s18, 0
      %p128 = por %p126, %p127
      %p129 = scmp.ne.s32.totalorder %s118, %s121
      %p130 = scmp.eq.s32.totalorder %s23, 7
      %p131 = por %p129, %p130
      %p132 = scmp.ne.s32.totalorder %s121, %s122
      %p133 = scmp.eq.s32.totalorder %s23, 0
      %p134 = por %p132, %p133
      %p135 = scmp.ne.s32.totalorder %s121, %s122
      %p136 = scmp.eq.s32.totalorder %s24, 7
      %p137 = por %p135, %p136
      %p139 = scmp.ne.s32.totalorder %s122, %s138
      %p140 = scmp.eq.s32.totalorder %s24, 0
      %p141 = por %p139, %p140
      %p142 = scmp.le.s32.totalorder 1, %s18
      %p143 = scmp.lt.s32.totalorder %s18, 9
      %p144 = pnand %p142, %p143
      %p145 = pneg %p144
      // Predicated region
      $region9: #{llama_mlp.1} parent=5 // pred_check
        _
      $region10: #{llama_mlp.1} parent=5 // pred_check_branch
        %147 = sbr.rel (%p144) target = $region12
      $region11: #{llama_mlp.1} parent=5 // pred_region
        %s148 = ssub.s32 %s18, 1
      $region12: #{llama_mlp.1} parent=5 // pred_fallthru
        _
      %p149 = scmp.lt.s32.totalorder %s18, 8
      // Predicated region
      $region13: #{llama_mlp.1} parent=5 // pred_check
        %p150 = pneg %p149
      $region14: #{llama_mlp.1} parent=5 // pred_check_branch
        %152 = sbr.rel (%p150) target = $region16
      $region15: #{llama_mlp.1} parent=5 // pred_region
        // Predicated region
        $region17: #{llama_mlp.1} parent=15 // pred_check
          %p153 = pneg %p50
        $region18: #{llama_mlp.1} parent=15 // pred_check_branch
          %155 = sbr.rel (%p153) target = $region20
        $region19: #{llama_mlp.1} parent=15 // pred_region
          %s156 = sand.u32 %s40, 1
          %s157 = scalar_lea.sflag [#allocation4], %s156
          %s158 = sand.u32 %s40, 1
          %s159 = smul.addr %s158, 128
          %s160 = scalar_lea.vmem [#allocation3], %s159
          %s161 = smul.u32 8, %s25
          %s163 = ssub.s32 2048, 2048
          %164 = vsyncadd %s157, %s163
          %s165 = smul.addr %s161, 2
          %s166 = smul.addr %s165, 128
          %s167 = scalar_lea.hbm %s0, %s166
          %s168 = sshll.u32 %s160, 4
          %s169 = int_to_ptr.vmem [resolvable:$true] %s168
          %174 = dma.hbm_to_vmem [thread:$0]  %s167, 2048, %s169, %s157, 256, 256, 16
        $region20: #{llama_mlp.1} parent=15 // pred_fallthru
          _
        // Predicated region
        $region21: #{llama_mlp.1} parent=15 // pred_check
          %p175 = pneg %p76
        $region22: #{llama_mlp.1} parent=15 // pred_check_branch
          %177 = sbr.rel (%p175) target = $region24
        $region23: #{llama_mlp.1} parent=15 // pred_region
          %s178 = sand.u32 %s18, 1
          %s179 = scalar_lea.sflag [#allocation7], %s178
          %s180 = sand.u32 %s66, 1
          %s181 = smul.addr %s180, 256
          %s182 = scalar_lea.vmem [#allocation6], %s181
          %s183 = smul.u32 2, %s26
          %s185 = ssub.s32 4096, 4096
          %186 = vsyncadd %s179, %s185
          %s187 = smul.addr %s183, 64
          %s188 = scalar_lea.hbm %s1, %s187
          %s189 = sshll.u32 %s182, 4
          %s190 = int_to_ptr.vmem [resolvable:$true] %s189
          %195 = dma.hbm_to_vmem [thread:$0]  %s188, 4096, %s190, %s179, 512, 128, 8
        $region24: #{llama_mlp.1} parent=15 // pred_fallthru
          _
        // Predicated region
        $region25: #{llama_mlp.1} parent=15 // pred_check
          %p196 = pneg %p102
        $region26: #{llama_mlp.1} parent=15 // pred_check_branch
          %198 = sbr.rel (%p196) target = $region28
        $region27: #{llama_mlp.1} parent=15 // pred_region
          %s199 = sand.u32 %s18, 1
          %s200 = scalar_lea.sflag [#allocation7], %s199
          %s201 = sand.u32 %s92, 1
          %s202 = smul.addr %s201, 128
          %s203 = scalar_lea.vmem [#allocation8], %s202
          %s204 = smul.u32 16, %s26
          %s206 = ssub.s32 2048, 2048
          %207 = vsyncadd %s200, %s206
          %s208 = smul.addr %s204, 2
          %s209 = smul.addr %s208, 64
          %s210 = scalar_lea.hbm %s2, %s209
          %s211 = sshll.u32 %s203, 4
          %s212 = int_to_ptr.vmem [resolvable:$true] %s211
          %217 = dma.hbm_to_vmem [thread:$0]  %s210, 2048, %s212, %s200, 128, 128, 8
        $region28: #{llama_mlp.1} parent=15 // pred_fallthru
          _
      $region16: #{llama_mlp.1} parent=5 // pred_fallthru
        _
      %p218 = scmp.le.s32.totalorder 1, %s18
      %p219 = scmp.lt.s32.totalorder %s18, 9
      %p220 = pnand %p218, %p219
      %p221 = pneg %p220
      // Predicated region
      $region29: #{llama_mlp.1} parent=5 // pred_check
        _
      $region30: #{llama_mlp.1} parent=5 // pred_check_branch
        %223 = sbr.rel (%p220) target = $region32
      $region31: #{llama_mlp.1} parent=5 // pred_region
        %s224 = ssub.s32 %s18, 1
        %s225 = sand.u32 %s43, 1
        %s226 = scalar_lea.sflag [#allocation4], %s225
        %s227 = sand.u32 %s43, 1
        %s228 = smul.addr %s227, 128
        %s229 = scalar_lea.vmem [#allocation3], %s228
        // Predicated region
        $region33: #{llama_mlp.1} parent=31 // pred_check
          %p230 = pneg %p56
        $region34: #{llama_mlp.1} parent=31 // pred_check_branch
          %232 = sbr.rel (%p230) target = $region36
        $region35: #{llama_mlp.1} parent=31 // pred_region
          %233 = dma.done %s226, 2048
        $region36: #{llama_mlp.1} parent=31 // pred_fallthru
          _
        %s234 = sand.u32 %s23, 1
        %s235 = scalar_lea.sflag [#allocation7], %s234
        %s236 = sand.u32 %s69, 1
        %s237 = smul.addr %s236, 256
        %s238 = scalar_lea.vmem [#allocation6], %s237
        // Predicated region
        $region37: #{llama_mlp.1} parent=31 // pred_check
          %p239 = pneg %p82
        $region38: #{llama_mlp.1} parent=31 // pred_check_branch
          %241 = sbr.rel (%p239) target = $region40
        $region39: #{llama_mlp.1} parent=31 // pred_region
          %242 = dma.done %s235, 4096
        $region40: #{llama_mlp.1} parent=31 // pred_fallthru
          _
        %s243 = sand.u32 %s23, 1
        %s244 = scalar_lea.sflag [#allocation7], %s243
        %s245 = sand.u32 %s95, 1
        %s246 = smul.addr %s245, 128
        %s247 = scalar_lea.vmem [#allocation8], %s246
        // Predicated region
        $region41: #{llama_mlp.1} parent=31 // pred_check
          %p248 = pneg %p108
        $region42: #{llama_mlp.1} parent=31 // pred_check_branch
          %250 = sbr.rel (%p248) target = $region44
        $region43: #{llama_mlp.1} parent=31 // pred_region
          %251 = dma.done %s244, 2048
        $region44: #{llama_mlp.1} parent=31 // pred_fallthru
          _
        %s252 = sand.u32 %s43, 1
        %s253 = scalar_lea.sflag [#allocation4], %s252
        %s254 = sand.u32 %s43, 1
        %s255 = smul.addr %s254, 128
        %s256 = scalar_lea.vmem [#allocation3], %s255
        %p257 = pneg %p56
        %p258 = pneg %p53
        %s259 = sand.u32 %s23, 1
        %s260 = scalar_lea.sflag [#allocation7], %s259
        %s261 = sand.u32 %s69, 1
        %s262 = smul.addr %s261, 256
        %s263 = scalar_lea.vmem [#allocation6], %s262
        %p264 = pneg %p82
        %p265 = pneg %p79
        %s266 = sand.u32 %s23, 1
        %s267 = scalar_lea.sflag [#allocation7], %s266
        %s268 = sand.u32 %s95, 1
        %s269 = smul.addr %s268, 128
        %s270 = scalar_lea.vmem [#allocation8], %s269
        %p271 = pneg %p108
        %p272 = pneg %p105
        %p273 = pneg %p134
        %p274 = pneg %p131
        %s275 = sand.u32 %s121, 1
        %s276 = scalar_lea.sflag [#allocation5], %s275
        %s277 = sand.u32 %s121, 1
        %s278 = smul.addr %s277, 64
        %s279 = scalar_lea.vmem [#allocation9], %s278
        %s280 = smul.u32 8, %s27
        %s281 = smul.u32 2, %s28
        %s282 = smul.u32 16, %s28
        %s283 = smul.u32 8, %s27
        %p285 = scmp.eq.s32.totalorder %s28, 0
        // Predicated region
        $region45: #{llama_mlp.1} parent=31 // pred_check
          %p286 = pneg %p285
        $region46: #{llama_mlp.1} parent=31 // pred_check_branch
          %288 = sbr.rel (%p286) target = $region48
        $region47: #{llama_mlp.1} parent=31 // pred_region
          %289 = vst [vmem:[#allocation2] sm:$0xff] 0.0
          %290 = vst [vmem:[#allocation2 + $0x8] sm:$0xff] 0.0
          %291 = vst [vmem:[#allocation2 + $0x10] sm:$0xff] 0.0
          %292 = vst [vmem:[#allocation2 + $0x18] sm:$0xff] 0.0
          %293 = vst [vmem:[#allocation2 + $0x20] sm:$0xff] 0.0
          %294 = vst [vmem:[#allocation2 + $0x28] sm:$0xff] 0.0
          %295 = vst [vmem:[#allocation2 + $0x30] sm:$0xff] 0.0
          %296 = vst [vmem:[#allocation2 + $0x38] sm:$0xff] 0.0
          %297 = vst [vmem:[#allocation2 + $0x40] sm:$0xff] 0.0
          %298 = vst [vmem:[#allocation2 + $0x48] sm:$0xff] 0.0
          %299 = vst [vmem:[#allocation2 + $0x50] sm:$0xff] 0.0
          %300 = vst [vmem:[#allocation2 + $0x58] sm:$0xff] 0.0
          %301 = vst [vmem:[#allocation2 + $0x60] sm:$0xff] 0.0
          %302 = vst [vmem:[#allocation2 + $0x68] sm:$0xff] 0.0
          %303 = vst [vmem:[#allocation2 + $0x70] sm:$0xff] 0.0
          %304 = vst [vmem:[#allocation2 + $0x78] sm:$0xff] 0.0
        $region48: #{llama_mlp.1} parent=31 // pred_fallthru
          _
        %v305 = vld [vmem:[%s229] sm:$0xff]
        %v306 = vld [vmem:[%s229 + $0x8] sm:$0xff]
        %v307 = vld [vmem:[%s229 + $0x10] sm:$0xff]
        %v308 = vld [vmem:[%s229 + $0x18] sm:$0xff]
        %v309 = vld [vmem:[%s229 + $0x20] sm:$0xff]
        %v310 = vld [vmem:[%s229 + $0x28] sm:$0xff]
        %v311 = vld [vmem:[%s229 + $0x30] sm:$0xff]
        %v312 = vld [vmem:[%s229 + $0x38] sm:$0xff]
        %v313 = vld [vmem:[%s229 + $0x40] sm:$0xff]
        %v314 = vld [vmem:[%s229 + $0x48] sm:$0xff]
        %v315 = vld [vmem:[%s229 + $0x50] sm:$0xff]
        %v316 = vld [vmem:[%s229 + $0x58] sm:$0xff]
        %v317 = vld [vmem:[%s229 + $0x60] sm:$0xff]
        %v318 = vld [vmem:[%s229 + $0x68] sm:$0xff]
        %v319 = vld [vmem:[%s229 + $0x70] sm:$0xff]
        %v320 = vld [vmem:[%s229 + $0x78] sm:$0xff]
        %v321 = vpack.c.bf16 %v307, %v305
        %v322 = vpack.c.bf16 %v308, %v306
        %v323 = vpack.c.bf16 %v311, %v309
        %v324 = vpack.c.bf16 %v312, %v310
        %v325 = vpack.c.bf16 %v315, %v313
        %v326 = vpack.c.bf16 %v316, %v314
        %v327 = vpack.c.bf16 %v319, %v317
        %v328 = vpack.c.bf16 %v320, %v318
        %v329 = vld [vmem:[%s238] sm:$0xff]
        %v330 = vld [vmem:[%s238 + $0x8] sm:$0xff]
        %v331 = vld [vmem:[%s238 + $0x10] sm:$0xff]
        %v332 = vld [vmem:[%s238 + $0x18] sm:$0xff]
        %v333 = vld [vmem:[%s238 + $0x20] sm:$0xff]
        %v334 = vld [vmem:[%s238 + $0x28] sm:$0xff]
        %v335 = vld [vmem:[%s238 + $0x30] sm:$0xff]
        %v336 = vld [vmem:[%s238 + $0x38] sm:$0xff]
        %v337 = vld [vmem:[%s238 + $0x40] sm:$0xff]
        %v338 = vld [vmem:[%s238 + $0x48] sm:$0xff]
        %v339 = vld [vmem:[%s238 + $0x50] sm:$0xff]
        %v340 = vld [vmem:[%s238 + $0x58] sm:$0xff]
        %v341 = vld [vmem:[%s238 + $0x60] sm:$0xff]
        %v342 = vld [vmem:[%s238 + $0x68] sm:$0xff]
        %v343 = vld [vmem:[%s238 + $0x70] sm:$0xff]
        %v344 = vld [vmem:[%s238 + $0x78] sm:$0xff]
        %v345 = vld [vmem:[%s238 + $0x80] sm:$0xff]
        %v346 = vld [vmem:[%s238 + $0x88] sm:$0xff]
        %v347 = vld [vmem:[%s238 + $0x90] sm:$0xff]
        %v348 = vld [vmem:[%s238 + $0x98] sm:$0xff]
        %v349 = vld [vmem:[%s238 + $0xa0] sm:$0xff]
        %v350 = vld [vmem:[%s238 + $0xa8] sm:$0xff]
        %v351 = vld [vmem:[%s238 + $0xb0] sm:$0xff]
        %v352 = vld [vmem:[%s238 + $0xb8] sm:$0xff]
        %v353 = vld [vmem:[%s238 + $0xc0] sm:$0xff]
        %v354 = vld [vmem:[%s238 + $0xc8] sm:$0xff]
        %v355 = vld [vmem:[%s238 + $0xd0] sm:$0xff]
        %v356 = vld [vmem:[%s238 + $0xd8] sm:$0xff]
        %v357 = vld [vmem:[%s238 + $0xe0] sm:$0xff]
        %v358 = vld [vmem:[%s238 + $0xe8] sm:$0xff]
        %v359 = vld [vmem:[%s238 + $0xf0] sm:$0xff]
        %v360 = vld [vmem:[%s238 + $0xf8] sm:$0xff]
        %v393 = vunpack.c.l.b16 %v329
        %v394 = vunpack.c.h.b16 %v329
        %v395 = vunpack.c.l.b16 %v330
        %v396 = vunpack.c.h.b16 %v330
        %v397 = vunpack.c.l.b16 %v331
        %v398 = vunpack.c.h.b16 %v331
        %v399 = vunpack.c.l.b16 %v332
        %v400 = vunpack.c.h.b16 %v332
        %v401 = vunpack.c.l.b16 %v333
        %v402 = vunpack.c.h.b16 %v333
        %v403 = vunpack.c.l.b16 %v334
        %v404 = vunpack.c.h.b16 %v334
        %v405 = vunpack.c.l.b16 %v335
        %v406 = vunpack.c.h.b16 %v335
        %v407 = vunpack.c.l.b16 %v336
        %v408 = vunpack.c.h.b16 %v336
        %v409 = vunpack.c.l.b16 %v337
        %v410 = vunpack.c.h.b16 %v337
        %v411 = vunpack.c.l.b16 %v338
        %v412 = vunpack.c.h.b16 %v338
        %v413 = vunpack.c.l.b16 %v339
        %v414 = vunpack.c.h.b16 %v339
        %v415 = vunpack.c.l.b16 %v340
        %v416 = vunpack.c.h.b16 %v340
        %v417 = vunpack.c.l.b16 %v341
        %v418 = vunpack.c.h.b16 %v341
        %v419 = vunpack.c.l.b16 %v342
        %v420 = vunpack.c.h.b16 %v342
        %v421 = vunpack.c.l.b16 %v343
        %v422 = vunpack.c.h.b16 %v343
        %v423 = vunpack.c.l.b16 %v344
        %v424 = vunpack.c.h.b16 %v344
        %v425 = vunpack.c.l.b16 %v345
        %v426 = vunpack.c.h.b16 %v345
        %v427 = vunpack.c.l.b16 %v346
        %v428 = vunpack.c.h.b16 %v346
        %v429 = vunpack.c.l.b16 %v347
        %v430 = vunpack.c.h.b16 %v347
        %v431 = vunpack.c.l.b16 %v348
        %v432 = vunpack.c.h.b16 %v348
        %v433 = vunpack.c.l.b16 %v349
        %v434 = vunpack.c.h.b16 %v349
        %v435 = vunpack.c.l.b16 %v350
        %v436 = vunpack.c.h.b16 %v350
        %v437 = vunpack.c.l.b16 %v351
        %v438 = vunpack.c.h.b16 %v351
        %v439 = vunpack.c.l.b16 %v352
        %v440 = vunpack.c.h.b16 %v352
        %v441 = vunpack.c.l.b16 %v353
        %v442 = vunpack.c.h.b16 %v353
        %v443 = vunpack.c.l.b16 %v354
        %v444 = vunpack.c.h.b16 %v354
        %v445 = vunpack.c.l.b16 %v355
        %v446 = vunpack.c.h.b16 %v355
        %v447 = vunpack.c.l.b16 %v356
        %v448 = vunpack.c.h.b16 %v356
        %v449 = vunpack.c.l.b16 %v357
        %v450 = vunpack.c.h.b16 %v357
        %v451 = vunpack.c.l.b16 %v358
        %v452 = vunpack.c.h.b16 %v358
        %v453 = vunpack.c.l.b16 %v359
        %v454 = vunpack.c.h.b16 %v359
        %v455 = vunpack.c.l.b16 %v360
        %v456 = vunpack.c.h.b16 %v360
        %v457 = vpack.c.b16 %v395, %v393
        %v458 = vpack.c.b16 %v396, %v394
        %v459 = vpack.c.b16 %v399, %v397
        %v460 = vpack.c.b16 %v400, %v398
        %v461 = vpack.c.b16 %v403, %v401
        %v462 = vpack.c.b16 %v404, %v402
        %v463 = vpack.c.b16 %v407, %v405
        %v464 = vpack.c.b16 %v408, %v406
        %v465 = vpack.c.b16 %v411, %v409
        %v466 = vpack.c.b16 %v412, %v410
        %v467 = vpack.c.b16 %v415, %v413
        %v468 = vpack.c.b16 %v416, %v414
        %v469 = vpack.c.b16 %v419, %v417
        %v470 = vpack.c.b16 %v420, %v418
        %v471 = vpack.c.b16 %v423, %v421
        %v472 = vpack.c.b16 %v424, %v422
        %v473 = vpack.c.b16 %v427, %v425
        %v474 = vpack.c.b16 %v428, %v426
        %v475 = vpack.c.b16 %v431, %v429
        %v476 = vpack.c.b16 %v432, %v430
        %v477 = vpack.c.b16 %v435, %v433
        %v478 = vpack.c.b16 %v436, %v434
        %v479 = vpack.c.b16 %v439, %v437
        %v480 = vpack.c.b16 %v440, %v438
        %v481 = vpack.c.b16 %v443, %v441
        %v482 = vpack.c.b16 %v444, %v442
        %v483 = vpack.c.b16 %v447, %v445
        %v484 = vpack.c.b16 %v448, %v446
        %v485 = vpack.c.b16 %v451, %v449
        %v486 = vpack.c.b16 %v452, %v450
        %v487 = vpack.c.b16 %v455, %v453
        %v488 = vpack.c.b16 %v456, %v454
        %521 = vmatprep.subr.bf16.mxu0 %v458
        %522 = vmatpush1.bf16.msra.mxu0 %v457
        %523 = vmatprep.subr.bf16.mxu0 %v460
        %524 = vmatpush1.bf16.msra.mxu0 %v459
        %525 = vmatprep.subr.bf16.mxu0 %v462
        %526 = vmatpush1.bf16.msra.mxu0 %v461
        %527 = vmatprep.subr.bf16.mxu0 %v464
        %528 = vmatpush1.bf16.msra.mxu0 %v463
        %529 = vmatprep.subr.bf16.mxu0 %v466
        %530 = vmatpush1.bf16.msra.mxu0 %v465
        %531 = vmatprep.subr.bf16.mxu0 %v468
        %532 = vmatpush1.bf16.msra.mxu0 %v467
        %533 = vmatprep.subr.bf16.mxu0 %v470
        %534 = vmatpush1.bf16.msra.mxu0 %v469
        %535 = vmatprep.subr.bf16.mxu0 %v472
        %536 = vmatpush1.bf16.msra.mxu0 %v471
        %537 = vmatprep.subr.bf16.mxu0 %v474
        %538 = vmatpush1.bf16.msra.mxu0 %v473
        %539 = vmatprep.subr.bf16.mxu0 %v476
        %540 = vmatpush1.bf16.msra.mxu0 %v475
        %541 = vmatprep.subr.bf16.mxu0 %v478
        %542 = vmatpush1.bf16.msra.mxu0 %v477
        %543 = vmatprep.subr.bf16.mxu0 %v480
        %544 = vmatpush1.bf16.msra.mxu0 %v479
        %545 = vmatprep.subr.bf16.mxu0 %v482
        %546 = vmatpush1.bf16.msra.mxu0 %v481
        %547 = vmatprep.subr.bf16.mxu0 %v484
        %548 = vmatpush1.bf16.msra.mxu0 %v483
        %549 = vmatprep.subr.bf16.mxu0 %v486
        %550 = vmatpush1.bf16.msra.mxu0 %v485
        %551 = vmatprep.subr.bf16.mxu0 %v488
        %552 = vmatpush1.bf16.msra.mxu0 %v487
        %553 = vmatprep.mubr.bf16.mxu0 %v322
        %554 = vmatmul.mubr.bf16.gmra.mrb[0].mxu0 %v321
        %v555 = vpop.f32.mrb[0].mxu0
        %v556 = vadd.f32 0.0, %v555
        %v557 = vpop.f32.mrb[0].mxu0
        %v558 = vadd.f32 0.0, %v557
        %v559 = vpop.f32.mrb[0].mxu0
        %v560 = vadd.f32 0.0, %v559
        %v561 = vpop.f32.mrb[0].mxu0
        %v562 = vadd.f32 0.0, %v561
        %563 = vmatprep.mubr.bf16.mxu0 %v324
        %564 = vmatmul.mubr.bf16.gmra.mrb[0].mxu0 %v323
        %v565 = vpop.f32.mrb[0].mxu0
        %v566 = vadd.f32 0.0, %v565
        %v567 = vpop.f32.mrb[0].mxu0
        %v568 = vadd.f32 0.0, %v567
        %v569 = vpop.f32.mrb[0].mxu0
        %v570 = vadd.f32 0.0, %v569
        %v571 = vpop.f32.mrb[0].mxu0
        %v572 = vadd.f32 0.0, %v571
        %573 = vmatprep.mubr.bf16.mxu0 %v326
        %574 = vmatmul.mubr.bf16.gmra.mrb[0].mxu0 %v325
        %v575 = vpop.f32.mrb[0].mxu0
        %v576 = vadd.f32 0.0, %v575
        %v577 = vpop.f32.mrb[0].mxu0
        %v578 = vadd.f32 0.0, %v577
        %v579 = vpop.f32.mrb[0].mxu0
        %v580 = vadd.f32 0.0, %v579
        %v581 = vpop.f32.mrb[0].mxu0
        %v582 = vadd.f32 0.0, %v581
        %583 = vmatprep.mubr.bf16.mxu0 %v328
        %584 = vmatmul.mubr.bf16.gmra.mrb[0].mxu0 %v327
        %v585 = vpop.f32.mrb[0].mxu0
        %v586 = vadd.f32 0.0, %v585
        %v587 = vpop.f32.mrb[0].mxu0
        %v588 = vadd.f32 0.0, %v587
        %v589 = vpop.f32.mrb[0].mxu0
        %v590 = vadd.f32 0.0, %v589
        %v591 = vpop.f32.mrb[0].mxu0
        %v592 = vadd.f32 0.0, %v591
        %593 = vdwg.mxu0
        %v594 = vxor.u32 %v556, 2147483648
        %v595 = vxor.u32 %v560, 2147483648
        %v596 = vxor.u32 %v566, 2147483648
        %v597 = vxor.u32 %v570, 2147483648
        %v598 = vxor.u32 %v576, 2147483648
        %v599 = vxor.u32 %v580, 2147483648
        %v600 = vxor.u32 %v586, 2147483648
        %v601 = vxor.u32 %v590, 2147483648
        %v602 = vmul.f32 %v594, 1.442695
        %v603 = vpow.pop %v602
        %v604 = vmul.f32 %v595, 1.442695
        %v605 = vpow.pop %v604
        %v606 = vmul.f32 %v596, 1.442695
        %v607 = vpow.pop %v606
        %v608 = vmul.f32 %v597, 1.442695
        %v609 = vpow.pop %v608
        %v610 = vmul.f32 %v598, 1.442695
        %v611 = vpow.pop %v610
        %v612 = vmul.f32 %v599, 1.442695
        %v613 = vpow.pop %v612
        %v614 = vmul.f32 %v600, 1.442695
        %v615 = vpow.pop %v614
        %v616 = vmul.f32 %v601, 1.442695
        %v617 = vpow.pop %v616
        %v618 = vadd.f32 %v603, 1.0
        %v619 = vadd.f32 %v605, 1.0
        %v620 = vadd.f32 %v607, 1.0
        %v621 = vadd.f32 %v609, 1.0
        %v622 = vadd.f32 %v611, 1.0
        %v623 = vadd.f32 %v613, 1.0
        %v624 = vadd.f32 %v615, 1.0
        %v625 = vadd.f32 %v617, 1.0
        %v626 = vrcp.pop %v618
        %v627 = vmul.f32 1.0, %v626
        %v628 = vrcp.pop %v619
        %v629 = vmul.f32 1.0, %v628
        %v630 = vrcp.pop %v620
        %v631 = vmul.f32 1.0, %v630
        %v632 = vrcp.pop %v621
        %v633 = vmul.f32 1.0, %v632
        %v634 = vrcp.pop %v622
        %v635 = vmul.f32 1.0, %v634
        %v636 = vrcp.pop %v623
        %v637 = vmul.f32 1.0, %v636
        %v638 = vrcp.pop %v624
        %v639 = vmul.f32 1.0, %v638
        %v640 = vrcp.pop %v625
        %v641 = vmul.f32 1.0, %v640
        %v642 = vmul.f32 %v556, %v627
        %v643 = vmul.f32 %v560, %v629
        %v644 = vmul.f32 %v566, %v631
        %v645 = vmul.f32 %v570, %v633
        %v646 = vmul.f32 %v576, %v635
        %v647 = vmul.f32 %v580, %v637
        %v648 = vmul.f32 %v586, %v639
        %v649 = vmul.f32 %v590, %v641
        %v650 = vmul.f32 %v642, %v558
        %v651 = vmul.f32 %v643, %v562
        %v652 = vmul.f32 %v644, %v568
        %v653 = vmul.f32 %v645, %v572
        %v654 = vmul.f32 %v646, %v578
        %v655 = vmul.f32 %v647, %v582
        %v656 = vmul.f32 %v648, %v588
        %v657 = vmul.f32 %v649, %v592
        %v658 = vld [vmem:[#allocation2] sm:$0xff]
        %v659 = vld [vmem:[#allocation2 + $0x8] sm:$0xff]
        %v660 = vld [vmem:[#allocation2 + $0x10] sm:$0xff]
        %v661 = vld [vmem:[#allocation2 + $0x18] sm:$0xff]
        %v662 = vld [vmem:[#allocation2 + $0x20] sm:$0xff]
        %v663 = vld [vmem:[#allocation2 + $0x28] sm:$0xff]
        %v664 = vld [vmem:[#allocation2 + $0x30] sm:$0xff]
        %v665 = vld [vmem:[#allocation2 + $0x38] sm:$0xff]
        %v666 = vld [vmem:[#allocation2 + $0x40] sm:$0xff]
        %v667 = vld [vmem:[#allocation2 + $0x48] sm:$0xff]
        %v668 = vld [vmem:[#allocation2 + $0x50] sm:$0xff]
        %v669 = vld [vmem:[#allocation2 + $0x58] sm:$0xff]
        %v670 = vld [vmem:[#allocation2 + $0x60] sm:$0xff]
        %v671 = vld [vmem:[#allocation2 + $0x68] sm:$0xff]
        %v672 = vld [vmem:[#allocation2 + $0x70] sm:$0xff]
        %v673 = vld [vmem:[#allocation2 + $0x78] sm:$0xff]
        %v674 = vpack.c.bf16 %v651, %v650
        %v675 = vpack.c.bf16 %v653, %v652
        %v676 = vpack.c.bf16 %v655, %v654
        %v677 = vpack.c.bf16 %v657, %v656
        %v678 = vld [vmem:[%s247] sm:$0xff]
        %v679 = vld [vmem:[%s247 + $0x8] sm:$0xff]
        %v680 = vld [vmem:[%s247 + $0x10] sm:$0xff]
        %v681 = vld [vmem:[%s247 + $0x18] sm:$0xff]
        %v682 = vld [vmem:[%s247 + $0x20] sm:$0xff]
        %v683 = vld [vmem:[%s247 + $0x28] sm:$0xff]
        %v684 = vld [vmem:[%s247 + $0x30] sm:$0xff]
        %v685 = vld [vmem:[%s247 + $0x38] sm:$0xff]
        %v686 = vld [vmem:[%s247 + $0x40] sm:$0xff]
        %v687 = vld [vmem:[%s247 + $0x48] sm:$0xff]
        %v688 = vld [vmem:[%s247 + $0x50] sm:$0xff]
        %v689 = vld [vmem:[%s247 + $0x58] sm:$0xff]
        %v690 = vld [vmem:[%s247 + $0x60] sm:$0xff]
        %v691 = vld [vmem:[%s247 + $0x68] sm:$0xff]
        %v692 = vld [vmem:[%s247 + $0x70] sm:$0xff]
        %v693 = vld [vmem:[%s247 + $0x78] sm:$0xff]
        %v710 = vunpack.c.l.b16 %v678
        %v711 = vunpack.c.h.b16 %v678
        %v712 = vunpack.c.l.b16 %v679
        %v713 = vunpack.c.h.b16 %v679
        %v714 = vunpack.c.l.b16 %v680
        %v715 = vunpack.c.h.b16 %v680
        %v716 = vunpack.c.l.b16 %v681
        %v717 = vunpack.c.h.b16 %v681
        %v718 = vunpack.c.l.b16 %v682
        %v719 = vunpack.c.h.b16 %v682
        %v720 = vunpack.c.l.b16 %v683
        %v721 = vunpack.c.h.b16 %v683
        %v722 = vunpack.c.l.b16 %v684
        %v723 = vunpack.c.h.b16 %v684
        %v724 = vunpack.c.l.b16 %v685
        %v725 = vunpack.c.h.b16 %v685
        %v726 = vunpack.c.l.b16 %v686
        %v727 = vunpack.c.h.b16 %v686
        %v728 = vunpack.c.l.b16 %v687
        %v729 = vunpack.c.h.b16 %v687
        %v730 = vunpack.c.l.b16 %v688
        %v731 = vunpack.c.h.b16 %v688
        %v732 = vunpack.c.l.b16 %v689
        %v733 = vunpack.c.h.b16 %v689
        %v734 = vunpack.c.l.b16 %v690
        %v735 = vunpack.c.h.b16 %v690
        %v736 = vunpack.c.l.b16 %v691
        %v737 = vunpack.c.h.b16 %v691
        %v738 = vunpack.c.l.b16 %v692
        %v739 = vunpack.c.h.b16 %v692
        %v740 = vunpack.c.l.b16 %v693
        %v741 = vunpack.c.h.b16 %v693
        %v742 = vpack.c.b16 %v712, %v710
        %v743 = vpack.c.b16 %v713, %v711
        %v744 = vpack.c.b16 %v716, %v714
        %v745 = vpack.c.b16 %v717, %v715
        %v746 = vpack.c.b16 %v720, %v718
        %v747 = vpack.c.b16 %v721, %v719
        %v748 = vpack.c.b16 %v724, %v722
        %v749 = vpack.c.b16 %v725, %v723
        %v750 = vpack.c.b16 %v728, %v726
        %v751 = vpack.c.b16 %v729, %v727
        %v752 = vpack.c.b16 %v732, %v730
        %v753 = vpack.c.b16 %v733, %v731
        %v754 = vpack.c.b16 %v736, %v734
        %v755 = vpack.c.b16 %v737, %v735
        %v756 = vpack.c.b16 %v740, %v738
        %v757 = vpack.c.b16 %v741, %v739
        %774 = vmatprep.subr.bf16.mxu0 %v743
        %775 = vmatpush1.bf16.msra.mxu0 %v742
        %776 = vmatprep.subr.bf16.mxu0 %v745
        %777 = vmatpush1.bf16.msra.mxu0 %v744
        %778 = vmatprep.subr.bf16.mxu0 %v747
        %779 = vmatpush1.bf16.msra.mxu0 %v746
        %780 = vmatprep.subr.bf16.mxu0 %v749
        %781 = vmatpush1.bf16.msra.mxu0 %v748
        %782 = vmatprep.subr.bf16.mxu0 %v751
        %783 = vmatpush1.bf16.msra.mxu0 %v750
        %784 = vmatprep.subr.bf16.mxu0 %v753
        %785 = vmatpush1.bf16.msra.mxu0 %v752
        %786 = vmatprep.subr.bf16.mxu0 %v755
        %787 = vmatpush1.bf16.msra.mxu0 %v754
        %788 = vmatprep.subr.bf16.mxu0 %v757
        %789 = vmatpush1.bf16.msra.mxu0 %v756
        %790 = vmatprep.subr.bf16.mxu0 0
        %791 = vmatpush1.bf16.msra.mxu0 0
        %792 = vmatprep.subr.bf16.mxu0 0
        %793 = vmatpush1.bf16.msra.mxu0 0
        %794 = vmatprep.subr.bf16.mxu0 0
        %795 = vmatpush1.bf16.msra.mxu0 0
        %796 = vmatprep.subr.bf16.mxu0 0
        %797 = vmatpush1.bf16.msra.mxu0 0
        %798 = vmatprep.subr.bf16.mxu0 0
        %799 = vmatpush1.bf16.msra.mxu0 0
        %800 = vmatprep.subr.bf16.mxu0 0
        %801 = vmatpush1.bf16.msra.mxu0 0
        %802 = vmatprep.subr.bf16.mxu0 0
        %803 = vmatpush1.bf16.msra.mxu0 0
        %804 = vmatprep.subr.bf16.mxu0 0
        %805 = vmatpush1.bf16.msra.mxu0 0
        %806 = vmatprep.mubr.bf16.mxu0 0
        %807 = vmatmul.mubr.bf16.gmra.mrb[0].mxu0 %v674
        %v808 = vpop.f32.mrb[0].mxu0
        %v809 = vadd.f32 0.0, %v808
        %v810 = vpop.f32.mrb[0].mxu0
        %v811 = vadd.f32 0.0, %v810
        %v812 = vpop.f32.mrb[0].mxu0
        %v813 = vadd.f32 0.0, %v812
        %v814 = vpop.f32.mrb[0].mxu0
        %v815 = vadd.f32 0.0, %v814
        %816 = vmatprep.mubr.bf16.mxu0 0
        %817 = vmatmul.mubr.bf16.gmra.mrb[0].mxu0 %v675
        %v818 = vpop.f32.mrb[0].mxu0
        %v819 = vadd.f32 0.0, %v818
        %v820 = vpop.f32.mrb[0].mxu0
        %v821 = vadd.f32 0.0, %v820
        %v822 = vpop.f32.mrb[0].mxu0
        %v823 = vadd.f32 0.0, %v822
        %v824 = vpop.f32.mrb[0].mxu0
        %v825 = vadd.f32 0.0, %v824
        %826 = vmatprep.mubr.bf16.mxu0 0
        %827 = vmatmul.mubr.bf16.gmra.mrb[0].mxu0 %v676
        %v828 = vpop.f32.mrb[0].mxu0
        %v829 = vadd.f32 0.0, %v828
        %v830 = vpop.f32.mrb[0].mxu0
        %v831 = vadd.f32 0.0, %v830
        %v832 = vpop.f32.mrb[0].mxu0
        %v833 = vadd.f32 0.0, %v832
        %v834 = vpop.f32.mrb[0].mxu0
        %v835 = vadd.f32 0.0, %v834
        %836 = vmatprep.mubr.bf16.mxu0 0
        %837 = vmatmul.mubr.bf16.gmra.mrb[0].mxu0 %v677
        %v838 = vpop.f32.mrb[0].mxu0
        %v839 = vadd.f32 0.0, %v838
        %v840 = vpop.f32.mrb[0].mxu0
        %v841 = vadd.f32 0.0, %v840
        %v842 = vpop.f32.mrb[0].mxu0
        %v843 = vadd.f32 0.0, %v842
        %v844 = vpop.f32.mrb[0].mxu0
        %v845 = vadd.f32 0.0, %v844
        %846 = vdwg.mxu0
        %v847 = vadd.f32 %v658, %v809
        %v848 = vadd.f32 %v659, %v811
        %v849 = vadd.f32 %v660, %v813
        %v850 = vadd.f32 %v661, %v815
        %v851 = vadd.f32 %v662, %v819
        %v852 = vadd.f32 %v663, %v821
        %v853 = vadd.f32 %v664, %v823
        %v854 = vadd.f32 %v665, %v825
        %v855 = vadd.f32 %v666, %v829
        %v856 = vadd.f32 %v667, %v831
        %v857 = vadd.f32 %v668, %v833
        %v858 = vadd.f32 %v669, %v835
        %v859 = vadd.f32 %v670, %v839
        %v860 = vadd.f32 %v671, %v841
        %v861 = vadd.f32 %v672, %v843
        %v862 = vadd.f32 %v673, %v845
        %863 = vst [vmem:[#allocation2] sm:$0xff] %v847
        %864 = vst [vmem:[#allocation2 + $0x8] sm:$0xff] %v848
        %865 = vst [vmem:[#allocation2 + $0x10] sm:$0xff] %v849
        %866 = vst [vmem:[#allocation2 + $0x18] sm:$0xff] %v850
        %867 = vst [vmem:[#allocation2 + $0x20] sm:$0xff] %v851
        %868 = vst [vmem:[#allocation2 + $0x28] sm:$0xff] %v852
        %869 = vst [vmem:[#allocation2 + $0x30] sm:$0xff] %v853
        %870 = vst [vmem:[#allocation2 + $0x38] sm:$0xff] %v854
        %871 = vst [vmem:[#allocation2 + $0x40] sm:$0xff] %v855
        %872 = vst [vmem:[#allocation2 + $0x48] sm:$0xff] %v856
        %873 = vst [vmem:[#allocation2 + $0x50] sm:$0xff] %v857
        %874 = vst [vmem:[#allocation2 + $0x58] sm:$0xff] %v858
        %875 = vst [vmem:[#allocation2 + $0x60] sm:$0xff] %v859
        %876 = vst [vmem:[#allocation2 + $0x68] sm:$0xff] %v860
        %877 = vst [vmem:[#allocation2 + $0x70] sm:$0xff] %v861
        %878 = vst [vmem:[#allocation2 + $0x78] sm:$0xff] %v862
        %p879 = scmp.eq.s32.totalorder %s28, 3
        // Predicated region
        $region49: #{llama_mlp.1} parent=31 // pred_check
          %p880 = pneg %p879
        $region50: #{llama_mlp.1} parent=31 // pred_check_branch
          %882 = sbr.rel (%p880) target = $region52
        $region51: #{llama_mlp.1} parent=31 // pred_region
          %v883 = vld [vmem:[#allocation2] sm:$0xff]
          %v884 = vld [vmem:[#allocation2 + $0x8] sm:$0xff]
          %v885 = vld [vmem:[#allocation2 + $0x10] sm:$0xff]
          %v886 = vld [vmem:[#allocation2 + $0x18] sm:$0xff]
          %v887 = vld [vmem:[#allocation2 + $0x20] sm:$0xff]
          %v888 = vld [vmem:[#allocation2 + $0x28] sm:$0xff]
          %v889 = vld [vmem:[#allocation2 + $0x30] sm:$0xff]
          %v890 = vld [vmem:[#allocation2 + $0x38] sm:$0xff]
          %v891 = vld [vmem:[#allocation2 + $0x40] sm:$0xff]
          %v892 = vld [vmem:[#allocation2 + $0x48] sm:$0xff]
          %v893 = vld [vmem:[#allocation2 + $0x50] sm:$0xff]
          %v894 = vld [vmem:[#allocation2 + $0x58] sm:$0xff]
          %v895 = vld [vmem:[#allocation2 + $0x60] sm:$0xff]
          %v896 = vld [vmem:[#allocation2 + $0x68] sm:$0xff]
          %v897 = vld [vmem:[#allocation2 + $0x70] sm:$0xff]
          %v898 = vld [vmem:[#allocation2 + $0x78] sm:$0xff]
          %v899 = vpack.c.bf16 %v885, %v883
          %v900 = vpack.c.bf16 %v886, %v884
          %v901 = vpack.c.bf16 %v889, %v887
          %v902 = vpack.c.bf16 %v890, %v888
          %v903 = vpack.c.bf16 %v893, %v891
          %v904 = vpack.c.bf16 %v894, %v892
          %v905 = vpack.c.bf16 %v897, %v895
          %v906 = vpack.c.bf16 %v898, %v896
          %v915 = vunpack.c.l.b16 %v899
          %v916 = vunpack.c.l.b16 %v900
          %v917 = vunpack.c.h.b16 %v899
          %v918 = vunpack.c.h.b16 %v900
          %v919 = vunpack.c.l.b16 %v901
          %v920 = vunpack.c.l.b16 %v902
          %v921 = vunpack.c.h.b16 %v901
          %v922 = vunpack.c.h.b16 %v902
          %v923 = vunpack.c.l.b16 %v903
          %v924 = vunpack.c.l.b16 %v904
          %v925 = vunpack.c.h.b16 %v903
          %v926 = vunpack.c.h.b16 %v904
          %v927 = vunpack.c.l.b16 %v905
          %v928 = vunpack.c.l.b16 %v906
          %v929 = vunpack.c.h.b16 %v905
          %v930 = vunpack.c.h.b16 %v906
          %v931 = vpack.c.b16 %v916, %v915
          %v932 = vpack.c.b16 %v918, %v917
          %v933 = vpack.c.b16 %v920, %v919
          %v934 = vpack.c.b16 %v922, %v921
          %v935 = vpack.c.b16 %v924, %v923
          %v936 = vpack.c.b16 %v926, %v925
          %v937 = vpack.c.b16 %v928, %v927
          %v938 = vpack.c.b16 %v930, %v929
          %947 = vst [vmem:[%s279] sm:$0xff] %v931
          %948 = vst [vmem:[%s279 + $0x8] sm:$0xff] %v932
          %949 = vst [vmem:[%s279 + $0x10] sm:$0xff] %v933
          %950 = vst [vmem:[%s279 + $0x18] sm:$0xff] %v934
          %951 = vst [vmem:[%s279 + $0x20] sm:$0xff] %v935
          %952 = vst [vmem:[%s279 + $0x28] sm:$0xff] %v936
          %953 = vst [vmem:[%s279 + $0x30] sm:$0xff] %v937
          %954 = vst [vmem:[%s279 + $0x38] sm:$0xff] %v938
        $region52: #{llama_mlp.1} parent=31 // pred_fallthru
          _
        %s955 = sand.u32 %s121, 1
        %s956 = scalar_lea.sflag [#allocation5], %s955
        %s957 = sand.u32 %s121, 1
        %s958 = smul.addr %s957, 64
        %s959 = scalar_lea.vmem [#allocation9], %s958
        // Predicated region
        $region53: #{llama_mlp.1} parent=31 // pred_check
          %p960 = pneg %p131
        $region54: #{llama_mlp.1} parent=31 // pred_check_branch
          %962 = sbr.rel (%p960) target = $region56
        $region55: #{llama_mlp.1} parent=31 // pred_region
          %s963 = smul.u32 8, %s27
          %s965 = ssub.s32 1024, 1024
          %966 = vsyncadd %s956, %s965
          %s967 = smul.addr %s963, 2
          %s968 = smul.addr %s967, 64
          %s969 = scalar_lea.hbm %s3, %s968
          %s970 = sshll.u32 %s959, 4
          %s971 = int_to_ptr.vmem [resolvable:$true] %s970
          %976 = dma.vmem_to_hbm [thread:$0]  %s971, 1024, %s969, %s956, 128, 128, 8
        $region56: #{llama_mlp.1} parent=31 // pred_fallthru
          _
      $region32: #{llama_mlp.1} parent=5 // pred_fallthru
        _
      %p977 = scmp.le.s32.totalorder 2, %s18
      // Predicated region
      $region57: #{llama_mlp.1} parent=5 // pred_check
        %p978 = pneg %p977
      $region58: #{llama_mlp.1} parent=5 // pred_check_branch
        %980 = sbr.rel (%p978) target = $region60
      $region59: #{llama_mlp.1} parent=5 // pred_region
        %s981 = ssub.s32 %s18, 2
        // Predicated region
        $region61: #{llama_mlp.1} parent=59 // pred_check
          %p982 = pneg %p137
        $region62: #{llama_mlp.1} parent=59 // pred_check_branch
          %984 = sbr.rel (%p982) target = $region64
        $region63: #{llama_mlp.1} parent=59 // pred_region
          %s985 = sand.u32 %s122, 1
          %s986 = scalar_lea.sflag [#allocation5], %s985
          %s987 = sand.u32 %s122, 1
          %s988 = smul.addr %s987, 64
          %s989 = scalar_lea.vmem [#allocation9], %s988
          %990 = dma.done %s986, 1024
        $region64: #{llama_mlp.1} parent=59 // pred_fallthru
          _
      $region60: #{llama_mlp.1} parent=5 // pred_fallthru
        _
    $region6: #{llama_mlp.1} parent=1 // loop_footer
      %s22 = sadd.s32 1, %s18
    $region7: #{llama_mlp.1} parent=1 // loop_footer_branch
      %17 = sbr.rel target = $region3
    $region8: #{llama_mlp.1} parent=1 // loop_exit
      _
    %991 = vsyncpa [#allocation4], 1
    %s992 = scalar_lea.sflag [#allocation4], 1
    %993 = vsyncpa %s992, 1
    %994 = vsyncpa [#allocation7], 1
    %s995 = scalar_lea.sflag [#allocation7], 1
    %996 = vsyncpa %s995, 1
    %997 = vsyncpa [#allocation5], 1
    %s998 = scalar_lea.sflag [#allocation5], 1
    %999 = vsyncpa %s998, 1

</llo_original>
